<compile_context>
chip_gen: v6e
topology: v6e:2x2x1
jax: 0.10.0
libtpu: 0.0.40
codegen_flags: <defaults>
</compile_context>

<pallas_src>
import functools
from types import SimpleNamespace

import jax
import jax.numpy as jnp
from jax import lax
from jax.experimental import pallas as pl
from jax.experimental.pallas import tpu as pltpu


# ---------------------------------------------------------------------------
# small helpers
# ---------------------------------------------------------------------------

def _pick_tile(n, cap, mult):
    """Largest divisor of n that is a multiple of `mult` and <= cap (else n)."""
    if n <= cap:
        return n
    t = (cap // mult) * mult
    while t >= mult:
        if n % t == 0:
            return t
        t -= mult
    return n


def avg_pool2d(x, k):
    B, C, H, W = x.shape
    return x.reshape(B, C, H // k, k, W // k, k).mean(axis=(3, 5))


def nearest_upsample(x, factor):
    return jnp.repeat(jnp.repeat(x, factor, axis=-2), factor, axis=-1)


# ---------------------------------------------------------------------------
# fused encoder + decoder kernel (1x1 conv feats -> cost volume -> head ->
# sigmoid -> inverse-depth binning -> depth / disp / lowest-cost bin)
# ---------------------------------------------------------------------------

def _fused_enc_dec_kernel(wf_ref, wb_ref, wd_ref, x_ref, y_ref,
                          depth_ref, disp_ref, low_ref, *, min_depth, max_depth):
    x = x_ref[0]                            # (Cin, tw) bf16
    y = y_ref[0]
    tw = x.shape[1]

    # single feature matmul over [ref | lookup] -> halves MXU push/pop count
    xy = jnp.concatenate([x, y], axis=1)    # (Cin, 2*tw)
    feats = jnp.maximum(
        jnp.dot(wf_ref[...], xy, preferred_element_type=jnp.float32), 0.0)   # (16, 2*tw)
    z = (feats[:, :tw] * feats[:, tw:]).astype(jnp.bfloat16)
    cost = jnp.dot(wb_ref[...], z, preferred_element_type=jnp.float32)       # (64, tw)

    # lowest-cost bin index (first-index argmin over the 64 bins); integer
    # select/min so the only f32 convert is on the reduced (1, tw) result.
    cmin = jnp.min(cost, axis=0, keepdims=True)
    bin_ids = lax.broadcasted_iota(jnp.int32, cost.shape, 0)
    low = jnp.min(jnp.where(cost <= cmin, bin_ids, 64), axis=0, keepdims=True)
    low_ref[0] = low.astype(jnp.float32)

    # decoder head: only one output channel is ever consumed -> VPU multiply +
    # sublane reduce against the (64, 1) weight column (no bf16 cast of cost,
    # no MXU drain for a 1-row result).
    head = jnp.sum(wd_ref[...] * cost, axis=0, keepdims=True)                # (1, tw)
    sigma = 1.0 / (1.0 + jnp.exp(-head))
    inv_max = 1.0 / max_depth
    inv_min = 1.0 / min_depth
    inv_d = inv_max + sigma * (inv_min - inv_max)
    depth_ref[0] = 1.0 / inv_d
    # disp = 1/(depth + 1e-8) == inv_d to within ~1e-7 relative; avoids a second
    # reciprocal (and the approx-reciprocal error of the previous version).
    disp_ref[0] = inv_d


def fused_encoder_decoder(ref_ds, look_mean, wf, wb, wd, min_depth, max_depth):
    """ref_ds / look_mean: (B, Cin, hw) bf16 -> depth/disp/lowest at half res (B,1,hw)."""
    B, Cin, hw = ref_ds.shape
    tw = _pick_tile(hw, 4096, 128)
    n_t = hw // tw
    out_sd = jax.ShapeDtypeStruct((B, 1, hw), jnp.float32)
    px_spec = pl.BlockSpec((1, Cin, tw), lambda b, t: (b, 0, t))
    out_spec = pl.BlockSpec((1, 1, tw), lambda b, t: (b, 0, t))
    depth_h, disp_h, low_h = pl.pallas_call(
        functools.partial(_fused_enc_dec_kernel, min_depth=min_depth, max_depth=max_depth),
        out_shape=(out_sd, out_sd, out_sd),
        grid=(B, n_t),
        in_specs=[pl.BlockSpec(wf.shape, lambda b, t: (0, 0)),
                  pl.BlockSpec(wb.shape, lambda b, t: (0, 0)),
                  pl.BlockSpec(wd.shape, lambda b, t: (0, 0)),
                  px_spec, px_spec],
        out_specs=(out_spec, out_spec, out_spec),
        compiler_params=pltpu.CompilerParams(
            dimension_semantics=("parallel", "parallel"),
            vmem_limit_bytes=32 * 1024 * 1024),
    )(wf, wb, wd, ref_ds, look_mean)
    return depth_h, disp_h, low_h


# ---------------------------------------------------------------------------
# backproject-depth + project-3D warp kernel (frames folded into the kernel)
# ---------------------------------------------------------------------------

def _warp_kernel(ik_ref, p_ref, d_ref, u_ref, v_ref, *, H, W, F, B):
    b = pl.program_id(0)
    t = pl.program_id(1)
    d = d_ref[0]                                                   # (th, W) f32
    th = d.shape[0]
    row0 = t * th
    py = (lax.broadcasted_iota(jnp.int32, d.shape, 0) + row0).astype(jnp.float32)
    px = lax.broadcasted_iota(jnp.int32, d.shape, 1).astype(jnp.float32)

    # backprojection is frame-independent: computed once per (batch, row-tile)
    ib = b * 9
    cam_x = (ik_ref[ib + 0] * px + ik_ref[ib + 1] * py + ik_ref[ib + 2]) * d
    cam_y = (ik_ref[ib + 3] * px + ik_ref[ib + 4] * py + ik_ref[ib + 5]) * d
    cam_z = (ik_ref[ib + 6] * px + ik_ref[ib + 7] * py + ik_ref[ib + 8]) * d

    un = 2.0 / (W - 1)
    vn = 2.0 / (H - 1)
    for f in range(F):                                             # static unroll over frames
        pb = (f * B + b) * 12
        pjx = p_ref[pb + 0] * cam_x + p_ref[pb + 1] * cam_y + p_ref[pb + 2] * cam_z + p_ref[pb + 3]
        pjy = p_ref[pb + 4] * cam_x + p_ref[pb + 5] * cam_y + p_ref[pb + 6] * cam_z + p_ref[pb + 7]
        pjz = p_ref[pb + 8] * cam_x + p_ref[pb + 9] * cam_y + p_ref[pb + 10] * cam_z + p_ref[pb + 11]
        inv_z = 1.0 / (pjz + 1e-7)          # exact: keeps the warp sub-pixel accurate
        u_ref[f, 0] = pjx * inv_z * un - 1.0
        v_ref[f, 0] = pjy * inv_z * vn - 1.0


def warp_pallas(depth, invK, Ks, Ts, H, W):
    """depth (B,1,H,W); Ks/Ts (F,B,4,4) -> normalized u, v planes (F,B,H,W)."""
    B = depth.shape[0]
    F_ = Ks.shape[0]
    P = jnp.matmul(Ks.astype(jnp.float32), Ts.astype(jnp.float32))[:, :, :3, :]
    p_flat = P.reshape(F_ * B * 12)                    # flat 1-D SMEM (no 2-D SMEM padding)
    ik_flat = invK[:, :3, :3].astype(jnp.float32).reshape(B * 9)
    d = depth.reshape(B, H, W).astype(jnp.float32)
    th = _pick_tile(H, 256, 8)
    n_t = H // th
    out_sd = jax.ShapeDtypeStruct((F_, B, H, W), jnp.float32)
    out_spec = pl.BlockSpec((F_, 1, th, W), lambda b, t: (0, b, t, 0))
    # TODO(synk): for W not a multiple of 128 (e.g. KITTI 1242) switch to a
    # lane-dense (H*W/128, 128) output slab to avoid masked partial stores.
    u, v = pl.pallas_call(
        functools.partial(_warp_kernel, H=H, W=W, F=F_, B=B),
        out_shape=(out_sd, out_sd),
        grid=(B, n_t),
        in_specs=[pl.BlockSpec(memory_space=pltpu.MemorySpace.SMEM),
                  pl.BlockSpec(memory_space=pltpu.MemorySpace.SMEM),
                  pl.BlockSpec((1, th, W), lambda b, t: (b, t, 0))],
        out_specs=(out_spec, out_spec),
        compiler_params=pltpu.CompilerParams(
            dimension_semantics=("parallel", "parallel"),
            vmem_limit_bytes=32 * 1024 * 1024),
    )(ik_flat, p_flat, d)
    return u, v


# ---------------------------------------------------------------------------
# masked L1 / L1-inv / L1-rel losses for all pairnet scales in one pallas_call.
# Predictions are read at their native resolutions; the nearest upsample happens
# in-kernel (exact 0/1 matmuls), so no full-res prediction is ever written to HBM
# and gt is read exactly once per row tile.
# ---------------------------------------------------------------------------

def _masked_loss_kernel(gt_ref, *refs, scales, min_depth, max_depth):
    pred_refs = refs[:-1]
    o_ref = refs[-1]
    g = gt_ref[...]                                      # (B, TR, W) f32
    Bsz, TR, W = g.shape
    m = jnp.where((g >= min_depth) & (g <= max_depth), 1.0, 0.0)
    g_inv = 1.0 / (g + 1e-8)                             # exact reciprocals in the loss path
    gim = g_inv * m
    for idx, s in enumerate(scales):
        p = pred_refs[idx][...]                          # (B, TR>>s, W>>s)
        f = 1 << s
        if f > 1:
            trs, ws = TR // f, W // f
            # exact nearest-neighbour upsample as two 0/1 matmuls (single nonzero
            # per row -> bit-exact); MXU is otherwise idle in this kernel and this
            # avoids Mosaic reshape/interleave relayouts.
            rw = (lax.broadcasted_iota(jnp.int32, (ws, W), 1) // f
                  == lax.broadcasted_iota(jnp.int32, (ws, W), 0)).astype(jnp.float32)
            rh = (lax.broadcasted_iota(jnp.int32, (TR, trs), 0) // f
                  == lax.broadcasted_iota(jnp.int32, (TR, trs), 1)).astype(jnp.float32)
            tmp = jnp.einsum('brw,bwx->brx', p, jnp.broadcast_to(rw, (Bsz, ws, W)),
                             preferred_element_type=jnp.float32)
            p = jnp.einsum('bhr,brx->bhx', jnp.broadcast_to(rh, (Bsz, TR, trs)), tmp,
                           preferred_element_type=jnp.float32)
        diff = jnp.abs(p - g)
        p_inv = 1.0 / (p + 1e-8)
        base = idx * 4
        o_ref[0, base + 0, :] = jnp.sum(diff * m, axis=(0, 1))
        o_ref[0, base + 1, :] = jnp.sum(jnp.abs(p_inv - g_inv) * m, axis=(0, 1))
        o_ref[0, base + 2, :] = jnp.sum(diff * gim, axis=(0, 1))
        o_ref[0, base + 3, :] = jnp.sum(m, axis=(0, 1))


def masked_loss_all_scales(preds_native, gt, scales, min_depth, max_depth):
    # preds_native: list of (B, H>>s, W>>s) f32 in `scales` order; gt (B, H, W)
    # returns (num_scales, 4) totals: [L1, L1-inv, L1-rel, valid-count]
    B, H, W = gt.shape
    # TR = H, or a multiple of 128 dividing H (keeps every scale's sub-block legal)
    TR = _pick_tile(H, 256, 128)
    n_t = H // TR
    ns = len(scales)
    in_specs = [pl.BlockSpec((B, TR, W), lambda t: (0, t, 0))]
    for s in scales:
        in_specs.append(pl.BlockSpec((B, TR >> s, W >> s), lambda t: (0, t, 0)))
    out = pl.pallas_call(
        functools.partial(_masked_loss_kernel, scales=tuple(scales),
                          min_depth=min_depth, max_depth=max_depth),
        out_shape=jax.ShapeDtypeStruct((n_t, 4 * ns, W), jnp.float32),
        grid=(n_t,),
        in_specs=in_specs,
        out_specs=pl.BlockSpec((1, 4 * ns, W), lambda t: (t, 0, 0)),
        compiler_params=pltpu.CompilerParams(
            dimension_semantics=("parallel",),
            vmem_limit_bytes=32 * 1024 * 1024),
    )(gt.astype(jnp.float32), *[p.astype(jnp.float32) for p in preds_native])
    return jnp.sum(out, axis=(0, 2)).reshape(ns, 4)


# ---------------------------------------------------------------------------
# plain-JAX glue
# ---------------------------------------------------------------------------

def grid_sample_border(img, u, v):
    # TODO(synk): F.grid_sample's data-dependent bilinear gather has no clean
    # BlockSpec-expressible Pallas equivalent; kept as a single XLA gather per
    # corner (border padding, align_corners=True). At real resolutions this is
    # the dominant cost; a row-window DMA / one-hot-matmul Pallas kernel is the
    # next step.
    B, C, H, W = img.shape
    x = (u + 1.0) * 0.5 * (W - 1)
    y = (v + 1.0) * 0.5 * (H - 1)
    x0 = jnp.floor(x)
    y0 = jnp.floor(y)
    wx1 = x - x0
    wy1 = y - y0
    wx0 = 1.0 - wx1
    wy0 = 1.0 - wy1
    x0i = jnp.clip(x0, 0, W - 1).astype(jnp.int32)
    x1i = jnp.clip(x0 + 1, 0, W - 1).astype(jnp.int32)
    y0i = jnp.clip(y0, 0, H - 1).astype(jnp.int32)
    y1i = jnp.clip(y0 + 1, 0, H - 1).astype(jnp.int32)
    img_flat = img.reshape(B, C, H * W)

    def gather(yi, xi):
        lin = (yi * W + xi).reshape(B, 1, H * W)
        lin = jnp.broadcast_to(lin, (B, C, H * W))
        return jnp.take_along_axis(img_flat, lin, axis=2).reshape(B, C, H, W)

    i00 = gather(y0i, x0i)
    i01 = gather(y0i, x1i)
    i10 = gather(y1i, x0i)
    i11 = gather(y1i, x1i)
    w00 = (wy0 * wx0)[:, None]
    w01 = (wy0 * wx1)[:, None]
    w10 = (wy1 * wx0)[:, None]
    w11 = (wy1 * wx1)[:, None]
    return w00 * i00 + w01 * i01 + w10 * i10 + w11 * i11


# ---------------------------------------------------------------------------
# PairNet pieces
# ---------------------------------------------------------------------------

def cal_poses(inputs, opt):
    # 4x4 pose matmuls are far below one kernel-launch overhead -> plain JAX.
    outputs = {}
    for f_i in opt.frame_ids[1:]:
        if f_i != "s":
            rel = jnp.matmul(inputs[("pose", f_i)].astype(jnp.float32),
                             inputs[("pose_inv", 0)].astype(jnp.float32))
            outputs[("cam_T_cam", 0, f_i)] = rel
    for f_i in opt.frame_ids[1:]:
        img = inputs[("color_aug", f_i, 0)]
        flags = (jnp.sum(img, axis=(1, 2, 3)) != 0).astype(jnp.float32)
        rel = jnp.matmul(inputs[("pose", f_i)].astype(jnp.float32),
                         inputs[("pose_inv", 0)].astype(jnp.float32))
        inputs[("relative_pose", f_i)] = rel * flags[:, None, None]
    return outputs


def encoder_decoder_standin(params, ref_frame, lookup_frames, relative_poses,
                            Ks_src, invK_ref, opt):
    # TODO(synk): DVMVS_PairNet_EncoderMatching / DepthDecoder_2D sources are not
    # provided; deterministic stand-in keeps the hot path (1x1-conv features,
    # 64-bin correlation cost volume, decoder head, inverse-depth binning) fused
    # in a single VMEM-resident Pallas kernel, but omits plane-sweep homographies.
    B, F_, C, H, W = lookup_frames.shape
    h2, w2 = H // 2, W // 2
    hw = h2 * w2
    # TODO(synk): the 2x avg-pool + lookup mean could also be fused into the
    # encoder kernel to skip one full-res HBM round trip.
    ref_ds = avg_pool2d(ref_frame, 2).reshape(B, C, hw).astype(jnp.bfloat16)
    look_ds = avg_pool2d(lookup_frames.reshape(B * F_, C, H, W), 2)
    look_mean = look_ds.reshape(B, F_, C, hw).mean(axis=1).astype(jnp.bfloat16)

    # slice/pad the tiny weight instead of padding activation tensors
    wf_full = params["w_feat"]
    if C <= wf_full.shape[1]:
        wf = wf_full[:, :C]
    else:
        wf = jnp.concatenate(
            [wf_full, jnp.zeros((wf_full.shape[0], C - wf_full.shape[1]), wf_full.dtype)], axis=1)
    wf = wf.astype(jnp.bfloat16)
    wb = params["w_bins"].astype(jnp.bfloat16)
    # only channel 0 of the decoder head is consumed -> pass just that row, as a
    # (64, 1) f32 column for the in-kernel VPU reduce.
    wd = params["w_dec"][0:1, :].T.astype(jnp.float32)

    depth_h, disp_h, low_h = fused_encoder_decoder(
        ref_ds, look_mean, wf, wb, wd, opt.min_depth, opt.max_depth)

    depth_half = depth_h.reshape(B, 1, h2, w2)
    disp_half = disp_h.reshape(B, 1, h2, w2)
    lowest = low_h.reshape(B, 1, h2, w2)
    # depth at full resolution is a module output (and loss/warp input), so it is
    # materialized once here; the warp kernel reads it directly.
    depth_full = nearest_upsample(depth_half, 2)
    disp_full = nearest_upsample(disp_half, 2)     # == 1/(depth_full + 1e-8)

    outputs = {}
    for s in range(5):
        outputs[("depth", 0, s)] = depth_full if s == 0 else avg_pool2d(depth_full, 2 ** s)
    outputs[("disp", 0)] = disp_full
    return outputs, lowest


def generate_images_pred(inputs, outputs, opt):
    H, W = opt.height, opt.width
    frame_ids = list(opt.frame_ids[1:])
    for scale in opt.scales:
        source_scale = 0
        depth = outputs[("depth", 0, scale)]
        if ("disp", scale) not in outputs:
            # only reachable for non-zero scales (module asserts a single scale);
            # scale-0 disparity comes fused from the decoder kernel.
            outputs[("disp", scale)] = 1.0 / (depth + 1e-8)

        invK_ref = inputs[("inv_K", source_scale)]
        K_plain = inputs[("K", source_scale)]
        has_per_frame_K = any((("K", f, source_scale) in inputs) for f in frame_ids)
        Ks_main = jnp.stack(
            [inputs.get(("K", f, source_scale), K_plain) for f in frame_ids], axis=0)
        Ks_plain = jnp.stack([K_plain for _ in frame_ids], axis=0)
        Ts = jnp.stack([outputs[("cam_T_cam", 0, f)] for f in frame_ids], axis=0)

        u, v = warp_pallas(depth, invK_ref, Ks_main, Ts, H, W)

        if "depth_gt" in inputs:
            u_gt, v_gt = warp_pallas(inputs["depth_gt"], invK_ref, Ks_plain, Ts, H, W)

        # is_multi path with returned depth and no depth_iters -> itr_list = [-1],
        # depth_cur = outputs[('depth',0,0)]; reuse the main warp when identical.
        depth_cur = outputs[("depth", 0, 0)]
        if (depth_cur is depth) and (not has_per_frame_K):
            u_it, v_it = u, v
        else:
            u_it, v_it = warp_pallas(depth_cur, invK_ref, Ks_plain, Ts, H, W)

        for i, f in enumerate(frame_ids):
            src = inputs[("color", f, source_scale)]
            outputs[("color", f, scale)] = grid_sample_border(src, u[i], v[i])
            if "depth_gt" in inputs:
                outputs[("color_gtdepth", f, scale)] = grid_sample_border(src, u_gt[i], v_gt[i])
            outputs[("color_iters", f, scale, -1)] = grid_sample_border(src, u_it[i], v_it[i])


def compute_pairnet_losses(is_train, inputs, outputs, opt):
    # TODO(synk): LossMeter/update_losses source not provided; masked L1 / L1-inv /
    # L1-rel means per prediction plus a weighted L1-inv optimizer loss.
    depth_gt = inputs["depth_gt"]
    B, _, H, W = depth_gt.shape
    weights = [1, 1, 1, 1, 1]
    pairnet_scales = [4, 3, 2, 1, 0]
    gt = depth_gt.reshape(B, H, W)
    preds = [outputs[("depth", 0, s)].reshape(B, H >> s, W >> s) for s in pairnet_scales]

    totals = masked_loss_all_scales(preds, gt, pairnet_scales, opt.min_depth, opt.max_depth)

    l1_vals, l1inv_vals, l1rel_vals = [], [], []
    optimizer_loss = 0.0
    for i, (w, s) in enumerate(zip(weights, pairnet_scales)):
        cnt = totals[i, 3]        # raw valid-pixel count (matches the PyTorch masked mean)
        l1_vals.append(totals[i, 0] / cnt)
        l1inv_vals.append(totals[i, 1] / cnt)
        l1rel_vals.append(totals[i, 2] / cnt)
        optimizer_loss = optimizer_loss + w * (totals[i, 1] / cnt)

    n = float(len(pairnet_scales))

    def meter(vals):
        total = sum(vals)
        return {"sum": total, "count": n, "avg": total / n}

    return meter(l1_vals), meter(l1inv_vals), meter(l1rel_vals), optimizer_loss


def pairnet_forward(params, inputs, opt, is_train=True):
    outputs = {}
    losses = {}
    inputs = dict(inputs)
    img_key = "color_aug" if is_train else "color"
    matching_ids = list(opt.frame_ids)

    ref_frame = inputs[(img_key, 0, 0)]
    lookup_frames = jnp.stack([inputs[(img_key, i, 0)] for i in matching_ids[1:]], axis=1)

    if is_train:
        losses["loss/L1"] = 0.0
        losses["loss/L1-inv"] = 0.0
        losses["loss/L1-rel"] = 0.0
    else:
        losses["batch_l1_meter_sum"] = 0.0
        losses["batch_l1_inv_meter_sum"] = 0.0
        losses["batch_l1_rel_meter_sum"] = 0.0
        losses["batch_l1_meter_count"] = 0.0

    pose_pred = cal_poses(inputs, opt)
    outputs.update(pose_pred)

    relative_poses = jnp.stack([inputs[("relative_pose", i)] for i in matching_ids[1:]], 1)
    Ks_src = jnp.stack([inputs[("K", 1)] for _ in matching_ids[1:]], 1)
    invK_ref = inputs[("inv_K", 1)]

    dec_out, lowest_cost = encoder_decoder_standin(
        params, ref_frame, lookup_frames, relative_poses, Ks_src, invK_ref, opt)
    outputs.update(dec_out)
    outputs["lowest_cost"] = nearest_upsample(lowest_cost, opt.height // lowest_cost.shape[2])

    generate_images_pred(inputs, outputs, opt)

    l1_m, l1_inv_m, l1_rel_m, optimizer_loss = compute_pairnet_losses(
        is_train, inputs, outputs, opt)
    if is_train:
        losses["loss/L1"] = losses["loss/L1"] + l1_m["avg"]
        losses["loss/L1-inv"] = losses["loss/L1-inv"] + l1_inv_m["avg"]
        losses["loss/L1-rel"] = losses["loss/L1-rel"] + l1_rel_m["avg"]
    else:
        losses["batch_l1_meter_sum"] += l1_m["sum"]
        losses["batch_l1_inv_meter_sum"] += l1_inv_m["sum"]
        losses["batch_l1_rel_meter_sum"] += l1_rel_m["sum"]
        losses["batch_l1_meter_count"] += l1_m["count"]
    losses["loss"] = optimizer_loss
    return outputs, losses


# ---------------------------------------------------------------------------
# Driver
# ---------------------------------------------------------------------------

if __name__ == "__main__":
    opt = SimpleNamespace(mode="train", height=32, width=32, scales=[0],
                          frame_ids=[0, -1, 1], min_depth=0.1, max_depth=10.0,
                          adaptive_bins=False, depth_binning="inverse",
                          num_depth_bins=64, loss_type="L1-inv")
    B = 2
    H, W = opt.height, opt.width

    # deterministic stand-in weights (shapes implied by num_depth_bins=64)
    pk = jax.random.split(jax.random.PRNGKey(42), 3)
    params = {
        "w_feat": 0.1 * jax.random.normal(pk[0], (16, 8), jnp.float32),
        "w_bins": 0.1 * jax.random.normal(pk[1], (64, 16), jnp.float32),
        "w_dec": 0.05 * jax.random.normal(pk[2], (8, 64), jnp.float32),
    }

    keys = jax.random.split(jax.random.PRNGKey(0), 8)
    inputs = {}
    for i, f in enumerate(opt.frame_ids):
        col = jax.random.uniform(keys[i], (B, 3, H, W), jnp.float32)
        inputs[("color", f, 0)] = col
        inputs[("color_aug", f, 0)] = col

    def make_pose(tx, ty, tz):
        T = jnp.eye(4, dtype=jnp.float32)
        T = T.at[0, 3].set(tx).at[1, 3].set(ty).at[2, 3].set(tz)
        return jnp.broadcast_to(T, (B, 4, 4))

    inputs[("pose", 0)] = make_pose(0.0, 0.0, 0.0)
    inputs[("pose_inv", 0)] = jnp.linalg.inv(inputs[("pose", 0)])
    inputs[("pose", -1)] = make_pose(0.10, 0.02, 0.05)
    inputs[("pose", 1)] = make_pose(-0.10, -0.02, -0.05)

    def make_K(scale):
        s = 2 ** scale
        K = jnp.array([[W / (2.0 * s), 0.0, W / (2.0 * s), 0.0],
                       [0.0, H / (2.0 * s), H / (2.0 * s), 0.0],
                       [0.0, 0.0, 1.0, 0.0],
                       [0.0, 0.0, 0.0, 1.0]], jnp.float32)
        return jnp.broadcast_to(K, (B, 4, 4))

    for s in (0, 1):
        inputs[("K", s)] = make_K(s)
        inputs[("inv_K", s)] = jnp.linalg.inv(make_K(s))

    inputs["depth_gt"] = 0.5 + 4.5 * jax.random.uniform(keys[5], (B, 1, H, W), jnp.float32)

    outputs, losses = pairnet_forward(params, inputs, opt, is_train=True)
    jax.block_until_ready(losses["loss"])
    jax.block_until_ready(outputs[("depth", 0, 0)])
    jax.block_until_ready(outputs[("color", 1, 0)])
    jax.block_until_ready(outputs["lowest_cost"])
    print("KERNEL_OK")
</pallas_src>

<mosaic_0001>
module attributes {stable_mosaic.version = 11 : i64} {
  func.func @_fused_enc_dec_kernel(%arg0: i32, %arg1: i32, %arg2: memref<16x3xbf16, #tpu.memory_space<vmem>>, %arg3: memref<64x16xbf16, #tpu.memory_space<vmem>>, %arg4: memref<64x1xf32, #tpu.memory_space<vmem>>, %arg5: memref<1x3x256xbf16, #tpu.memory_space<vmem>>, %arg6: memref<1x3x256xbf16, #tpu.memory_space<vmem>>, %arg7: memref<1x1x256xf32, #tpu.memory_space<vmem>>, %arg8: memref<1x1x256xf32, #tpu.memory_space<vmem>>, %arg9: memref<1x1x256xf32, #tpu.memory_space<vmem>>) attributes {dimension_semantics = [#tpu.dimension_semantics<parallel>, #tpu.dimension_semantics<parallel>], iteration_bounds = array<i64: 2, 1>, scalar_prefetch = 0 : i64, scratch_operands = 0 : i64, tpu.core_type = #tpu.core_type<tc>, window_params = [{pipeline_mode = #tpu.pipeline_mode<synchronous>, transform_indices = @transform_0, window_bounds = array<i64: 16, 3>}, {pipeline_mode = #tpu.pipeline_mode<synchronous>, transform_indices = @transform_1, window_bounds = array<i64: 64, 16>}, {pipeline_mode = #tpu.pipeline_mode<synchronous>, transform_indices = @transform_2, window_bounds = array<i64: 64, 1>}, {transform_indices = @transform_3, window_bounds = array<i64: 1, 3, 256>}, {transform_indices = @transform_4, window_bounds = array<i64: 1, 3, 256>}, {transform_indices = @transform_5, window_bounds = array<i64: 1, 1, 256>}, {transform_indices = @transform_6, window_bounds = array<i64: 1, 1, 256>}, {transform_indices = @transform_7, window_bounds = array<i64: 1, 1, 256>}]} {
    %c0 = arith.constant 0 : index
    %c0_0 = arith.constant 0 : index
    %c0_1 = arith.constant 0 : index
    %0 = vector.load %arg5[%c0, %c0_0, %c0_1] : memref<1x3x256xbf16, #tpu.memory_space<vmem>>, vector<1x3x256xbf16>
    %1 = vector.shape_cast %0 : vector<1x3x256xbf16> to vector<3x256xbf16>
    %c0_2 = arith.constant 0 : index
    %c0_3 = arith.constant 0 : index
    %c0_4 = arith.constant 0 : index
    %2 = vector.load %arg6[%c0_2, %c0_3, %c0_4] : memref<1x3x256xbf16, #tpu.memory_space<vmem>>, vector<1x3x256xbf16>
    %3 = vector.shape_cast %2 : vector<1x3x256xbf16> to vector<3x256xbf16>
    %4 = tpu.concatenate %1, %3 in 1 : vector<3x256xbf16>, vector<3x256xbf16> -> vector<3x512xbf16>
    %c0_5 = arith.constant 0 : index
    %c0_6 = arith.constant 0 : index
    %5 = vector.load %arg2[%c0_5, %c0_6] : memref<16x3xbf16, #tpu.memory_space<vmem>>, vector<16x3xbf16>
    %cst = arith.constant dense<0.000000e+00> : vector<16x512xf32>
    %6 = tpu.matmul %5, %4, %cst {dimension_numbers = #tpu.dot_dimension_numbers<[1], [0], [0], [1], [0, 0, 1, 1], [], []>} : vector<16x3xbf16>, vector<3x512xbf16>, vector<16x512xf32> -> vector<16x512xf32>
    %cst_7 = arith.constant 0.000000e+00 : f32
    %7 = vector.broadcast %cst_7 : f32 to vector<16x512xf32>
    %8 = arith.maximumf %6, %7 : vector<16x512xf32>
    %9 = vector.extract_strided_slice %8 {offsets = [0, 0], sizes = [16, 256], strides = [1, 1]} : vector<16x512xf32> to vector<16x256xf32>
    %10 = vector.extract_strided_slice %8 {offsets = [0, 256], sizes = [16, 256], strides = [1, 1]} : vector<16x512xf32> to vector<16x256xf32>
    %11 = arith.mulf %9, %10 : vector<16x256xf32>
    %12 = arith.truncf %11 : vector<16x256xf32> to vector<16x256xbf16>
    %c0_8 = arith.constant 0 : index
    %c0_9 = arith.constant 0 : index
    %13 = vector.load %arg3[%c0_8, %c0_9] : memref<64x16xbf16, #tpu.memory_space<vmem>>, vector<64x16xbf16>
    %cst_10 = arith.constant dense<0.000000e+00> : vector<64x256xf32>
    %14 = tpu.matmul %13, %12, %cst_10 {dimension_numbers = #tpu.dot_dimension_numbers<[1], [0], [0], [1], [0, 0, 1, 1], [], []>} : vector<64x16xbf16>, vector<16x256xbf16>, vector<64x256xf32> -> vector<64x256xf32>
    %cst_11 = arith.constant dense<0x7F800000> : vector<256xf32>
    %15 = vector.multi_reduction <minimumf>, %14, %cst_11 [0] : vector<64x256xf32> to vector<256xf32>
    %16 = vector.shape_cast %15 : vector<256xf32> to vector<1x256xf32>
    %17 = tpu.iota {dimensions = array<i32: 0>} : vector<64x256xi32>
    %18 = vector.broadcast %16 : vector<1x256xf32> to vector<64x256xf32>
    %19 = arith.cmpf ole, %14, %18 : vector<64x256xf32>
    %c64_i32 = arith.constant 64 : i32
    %20 = vector.broadcast %c64_i32 : i32 to vector<64x256xi32>
    %21 = arith.select %19, %17, %20 : vector<64x256xi1>, vector<64x256xi32>
    %cst_12 = arith.constant dense<2147483647> : vector<256xi32>
    %22 = vector.multi_reduction <minsi>, %21, %cst_12 [0] : vector<64x256xi32> to vector<256xi32>
    %23 = vector.shape_cast %22 : vector<256xi32> to vector<1x256xi32>
    %24 = arith.sitofp %23 : vector<1x256xi32> to vector<1x256xf32>
    %c0_13 = arith.constant 0 : index
    %c0_14 = arith.constant 0 : index
    %c0_15 = arith.constant 0 : index
    %25 = vector.load %arg9[%c0_13, %c0_14, %c0_15] : memref<1x1x256xf32, #tpu.memory_space<vmem>>, vector<1x1x256xf32>
    %26 = vector.shape_cast %25 : vector<1x1x256xf32> to vector<1x256xf32>
    %27 = vector.shape_cast %24 : vector<1x256xf32> to vector<1x1x256xf32>
    tpu.vector_store %arg9[%c0_13, %c0_14, %c0_15], %27 {strides = array<i32>} : memref<1x1x256xf32, #tpu.memory_space<vmem>>, vector<1x1x256xf32>,
    %c0_16 = arith.constant 0 : index
    %c0_17 = arith.constant 0 : index
    %28 = vector.load %arg4[%c0_16, %c0_17] : memref<64x1xf32, #tpu.memory_space<vmem>>, vector<64x1xf32>
    %29 = vector.broadcast %28 : vector<64x1xf32> to vector<64x256xf32>
    %30 = arith.mulf %29, %14 : vector<64x256xf32>
    %cst_18 = arith.constant dense<0.000000e+00> : vector<256xf32>
    %31 = vector.multi_reduction <add>, %30, %cst_18 [0] : vector<64x256xf32> to vector<256xf32>
    %32 = vector.shape_cast %31 : vector<256xf32> to vector<1x256xf32>
    %cst_19 = arith.constant 0.000000e+00 : f32
    %33 = vector.broadcast %cst_19 : f32 to vector<1x256xf32>
    %34 = arith.subf %33, %32 : vector<1x256xf32>
    %35 = math.exp %34 : vector<1x256xf32>
    %cst_20 = arith.constant 1.000000e+00 : f32
    %36 = vector.broadcast %cst_20 : f32 to vector<1x256xf32>
    %37 = arith.addf %36, %35 : vector<1x256xf32>
    %cst_21 = arith.constant 1.000000e+00 : f32
    %38 = vector.broadcast %cst_21 : f32 to vector<1x256xf32>
    %39 = arith.divf %38, %37 : vector<1x256xf32>
    %cst_22 = arith.constant 9.89999961 : f32
    %40 = vector.broadcast %cst_22 : f32 to vector<1x256xf32>
    %41 = arith.mulf %39, %40 : vector<1x256xf32>
    %cst_23 = arith.constant 1.000000e-01 : f32
    %42 = vector.broadcast %cst_23 : f32 to vector<1x256xf32>
    %43 = arith.addf %42, %41 : vector<1x256xf32>
    %cst_24 = arith.constant 1.000000e+00 : f32
    %44 = vector.broadcast %cst_24 : f32 to vector<1x256xf32>
    %45 = arith.divf %44, %43 : vector<1x256xf32>
    %c0_25 = arith.constant 0 : index
    %c0_26 = arith.constant 0 : index
    %c0_27 = arith.constant 0 : index
    %46 = vector.load %arg7[%c0_25, %c0_26, %c0_27] : memref<1x1x256xf32, #tpu.memory_space<vmem>>, vector<1x1x256xf32>
    %47 = vector.shape_cast %46 : vector<1x1x256xf32> to vector<1x256xf32>
    %48 = vector.shape_cast %45 : vector<1x256xf32> to vector<1x1x256xf32>
    tpu.vector_store %arg7[%c0_25, %c0_26, %c0_27], %48 {strides = array<i32>} : memref<1x1x256xf32, #tpu.memory_space<vmem>>, vector<1x1x256xf32>,
    %c0_28 = arith.constant 0 : index
    %c0_29 = arith.constant 0 : index
    %c0_30 = arith.constant 0 : index
    %49 = vector.load %arg8[%c0_28, %c0_29, %c0_30] : memref<1x1x256xf32, #tpu.memory_space<vmem>>, vector<1x1x256xf32>
    %50 = vector.shape_cast %49 : vector<1x1x256xf32> to vector<1x256xf32>
    %51 = vector.shape_cast %43 : vector<1x256xf32> to vector<1x1x256xf32>
    tpu.vector_store %arg8[%c0_28, %c0_29, %c0_30], %51 {strides = array<i32>} : memref<1x1x256xf32, #tpu.memory_space<vmem>>, vector<1x1x256xf32>,
    return
  }
  func.func @transform_0(%arg0: i32, %arg1: i32) -> (i32, i32) {
    %c0_i32 = arith.constant 0 : i32
    %c0_i32_0 = arith.constant 0 : i32
    %c0_i32_1 = arith.constant 0 : i32
    return %c0_i32, %c0_i32_0 : i32, i32
  }
  func.func @transform_1(%arg0: i32, %arg1: i32) -> (i32, i32) {
    %c0_i32 = arith.constant 0 : i32
    %c0_i32_0 = arith.constant 0 : i32
    %c0_i32_1 = arith.constant 0 : i32
    return %c0_i32, %c0_i32_0 : i32, i32
  }
  func.func @transform_2(%arg0: i32, %arg1: i32) -> (i32, i32) {
    %c0_i32 = arith.constant 0 : i32
    %c0_i32_0 = arith.constant 0 : i32
    %c0_i32_1 = arith.constant 0 : i32
    return %c0_i32, %c0_i32_0 : i32, i32
  }
  func.func @transform_3(%arg0: i32, %arg1: i32) -> (i32, i32, i32) {
    %c0_i32 = arith.constant 0 : i32
    %c0_i32_0 = arith.constant 0 : i32
    return %arg0, %c0_i32, %arg1 : i32, i32, i32
  }
  func.func @transform_4(%arg0: i32, %arg1: i32) -> (i32, i32, i32) {
    %c0_i32 = arith.constant 0 : i32
    %c0_i32_0 = arith.constant 0 : i32
    return %arg0, %c0_i32, %arg1 : i32, i32, i32
  }
  func.func @transform_5(%arg0: i32, %arg1: i32) -> (i32, i32, i32) {
    %c0_i32 = arith.constant 0 : i32
    %c0_i32_0 = arith.constant 0 : i32
    return %arg0, %c0_i32, %arg1 : i32, i32, i32
  }
  func.func @transform_6(%arg0: i32, %arg1: i32) -> (i32, i32, i32) {
    %c0_i32 = arith.constant 0 : i32
    %c0_i32_0 = arith.constant 0 : i32
    return %arg0, %c0_i32, %arg1 : i32, i32, i32
  }
  func.func @transform_7(%arg0: i32, %arg1: i32) -> (i32, i32, i32) {
    %c0_i32 = arith.constant 0 : i32
    %c0_i32_0 = arith.constant 0 : i32
    return %arg0, %c0_i32, %arg1 : i32, i32, i32
  }
}

</mosaic_0001>

<llo_original>
// kernel: tpu_custom_call.1
$region0: #{tpu_custom_call.1}
  #allocation0 [shape = 'u32[]', space=smem, size = 0x4, offset = 0x4, fixed_abs, tag = 'smem constant byte address 0x4 - core index']
  #allocation1 [shape = 'u32[144,128]{1,0:T(1,128)}', space=vmem, size = 0x12000, scoped, tag = 'internal scratch']
  %s0 = inlined_call_operand.vmem [shape: bf16[16,3], index: 0, kind: input, shape index: {}]
  %s1 = inlined_call_operand.vmem [shape: bf16[64,16], index: 1, kind: input, shape index: {}]
  %s2 = inlined_call_operand.vmem [shape: f32[64,1], index: 2, kind: input, shape index: {}]
  %s3 = inlined_call_operand.vmem [shape: bf16[2,3,256], index: 3, kind: input, shape index: {}]
  %s4 = inlined_call_operand.vmem [shape: bf16[2,3,256], index: 4, kind: input, shape index: {}]
  %s5 = inlined_call_operand.hbm [shape: f32[2,1,256], index: 5, kind: output, shape index: {0}]
  %s6 = inlined_call_operand.hbm [shape: f32[2,1,256], index: 6, kind: output, shape index: {1}]
  %s7 = inlined_call_operand.hbm [shape: f32[2,1,256], index: 7, kind: output, shape index: {2}]
  %8 = xla_tuple %s5, %s6, %s7
  %s9 = sld [smem:[#allocation0]]
  $region69: #{tpu_custom_call.1} parent=0
    _
  %s11 = ssub.s32 1, %s9
  %s12 = scalar_select 0, %s11, %s9
  $region1: #{tpu_custom_call.1} parent=0
    #allocation2 [shape = 'u8[2048]{0}', space=vmem, size = 0x800, scoped, tag = 'output window, operand 0']
    #allocation3 [shape = 's32[2]{0}', space=sflag, size = 0x8, scoped, tag = 'scoped memory for tpu_custom_call.1']
    #allocation4 [shape = 'u8[2048]{0}', space=vmem, size = 0x800, scoped, tag = 'output window, operand 1']
    #allocation5 [shape = 's32[2]{0}', space=sflag, size = 0x8, scoped, tag = 'scoped memory for tpu_custom_call.1']
    #allocation6 [shape = 'u8[2048]{0}', space=vmem, size = 0x800, scoped, tag = 'output window, operand 2']
    %13 = vsyncpa [#allocation3], 0
    %s14 = scalar_lea.sflag [#allocation3], 1
    %15 = vsyncpa %s14, 0
    %16 = vsyncpa [#allocation5], 0
    %s17 = scalar_lea.sflag [#allocation5], 1
    %18 = vsyncpa %s17, 0
    loop: start=0, step=1, limit=4
    $region2: #{tpu_custom_call.1} parent=1 // loop_pre_header
      _
    $region3: #{tpu_custom_call.1} parent=1 // loop_header
      %s20 = sphi 0, %s24
      %p21 = scmp.ge.s32.totalorder %s20, 4
      %s27 = sphi 0, %s39
      %s28 = sphi 0, %s35
      %s29 = sphi 0, %s27
      %s30 = sphi 0, %s28
      %s31 = sphi 0, %s29
      %s32 = sphi 0, %s30
      %s40 = sphi 0, %s40
      %s42 = sphi 0, %s40
      %s43 = sphi 0, %s42
      %s57 = sphi 0, %s43
      %s61 = sphi 0, %s61
      %s63 = sphi 0, %s61
      %s64 = sphi 0, %s63
      %s78 = sphi 0, %s64
      %s82 = sphi 0, %s82
      %s84 = sphi 0, %s82
      %s85 = sphi 0, %s84
      %s99 = sphi 0, %s85
      %s107 = sphi 0, %s109
      %s110 = sphi 0, %s107
      %s111 = sphi 0, %s110
      %s127 = sphi 0, %s111
      %s135 = sphi 0, %s137
      %s138 = sphi 0, %s135
      %s139 = sphi 0, %s138
      %s155 = sphi 0, %s139
      %s163 = sphi 0, %s165
      %s166 = sphi 0, %s163
      %s167 = sphi 0, %s166
      %s183 = sphi 0, %s167
      %s191 = sphi 0, %s193
      %s194 = sphi 0, %s191
      %s195 = sphi 0, %s194
      %s211 = sphi 0, %s195
      %s219 = sphi 0, %s221
      %s222 = sphi 0, %s219
      %s223 = sphi 0, %s222
      %s239 = sphi 0, %s223
    $region4: #{tpu_custom_call.1} parent=1 // loop_header_branch
      %23 = sbr.rel (%p21) target = $region8
    $region5: #{tpu_custom_call.1} parent=1 // loop_body
      %s25 = ssub.s32 %s20, 1
      %s26 = ssub.s32 %s20, 2
      %s33 = sadd.s32 1, %s28
      %p34 = scmp.ge.s32.totalorder %s33, 1
      %s35 = scalar_select %p34, 0, %s33
      %s36 = sadd.s32 1, %s27
      %s37 = scalar_select %p34, %s36, %s27
      %p38 = scmp.ge.s32.totalorder %s37, 2
      %s39 = scalar_select %p38, 0, %s37
      %s41 = sadd.s32 %s40, 1
      %p44 = scmp.eq.s32.totalorder %s20, 1
      %p45 = scmp.ne.s32.totalorder %s40, %s42
      %p46 = scmp.eq.s32.totalorder %s20, 0
      %p47 = por %p45, %p46
      %p48 = scmp.ne.s32.totalorder %s40, %s42
      %p49 = scmp.eq.s32.totalorder %s25, 1
      %p50 = por %p48, %p49
      %p51 = scmp.ne.s32.totalorder %s42, %s43
      %p52 = scmp.eq.s32.totalorder %s25, 0
      %p53 = por %p51, %p52
      %p54 = scmp.ne.s32.totalorder %s42, %s43
      %p55 = scmp.eq.s32.totalorder %s26, 1
      %p56 = por %p54, %p55
      %p58 = scmp.ne.s32.totalorder %s43, %s57
      %p59 = scmp.eq.s32.totalorder %s26, 0
      %p60 = por %p58, %p59
      %s62 = sadd.s32 %s61, 1
      %p65 = scmp.eq.s32.totalorder %s20, 1
      %p66 = scmp.ne.s32.totalorder %s61, %s63
      %p67 = scmp.eq.s32.totalorder %s20, 0
      %p68 = por %p66, %p67
      %p69 = scmp.ne.s32.totalorder %s61, %s63
      %p70 = scmp.eq.s32.totalorder %s25, 1
      %p71 = por %p69, %p70
      %p72 = scmp.ne.s32.totalorder %s63, %s64
      %p73 = scmp.eq.s32.totalorder %s25, 0
      %p74 = por %p72, %p73
      %p75 = scmp.ne.s32.totalorder %s63, %s64
      %p76 = scmp.eq.s32.totalorder %s26, 1
      %p77 = por %p75, %p76
      %p79 = scmp.ne.s32.totalorder %s64, %s78
      %p80 = scmp.eq.s32.totalorder %s26, 0
      %p81 = por %p79, %p80
      %s83 = sadd.s32 %s82, 1
      %p86 = scmp.eq.s32.totalorder %s20, 1
      %p87 = scmp.ne.s32.totalorder %s82, %s84
      %p88 = scmp.eq.s32.totalorder %s20, 0
      %p89 = por %p87, %p88
      %p90 = scmp.ne.s32.totalorder %s82, %s84
      %p91 = scmp.eq.s32.totalorder %s25, 1
      %p92 = por %p90, %p91
      %p93 = scmp.ne.s32.totalorder %s84, %s85
      %p94 = scmp.eq.s32.totalorder %s25, 0
      %p95 = por %p93, %p94
      %p96 = scmp.ne.s32.totalorder %s84, %s85
      %p97 = scmp.eq.s32.totalorder %s26, 1
      %p98 = por %p96, %p97
      %p100 = scmp.ne.s32.totalorder %s85, %s99
      %p101 = scmp.eq.s32.totalorder %s26, 0
      %p102 = por %p100, %p101
      %s103 = ssub.s32 %s27, %s39
      %s104 = ssub.s32 %s28, %s35
      %s105 = sor.u32 %s103, %s104
      %p106 = scmp.eq.s32.totalorder %s105, 0
      %s108 = sadd.s32 %s107, 1
      %s109 = scalar_select %p106, %s107, %s108
      %p112 = pneg %p106
      %p113 = scmp.eq.s32.totalorder %s20, 1
      %p114 = por %p112, %p113
      %p115 = scmp.ne.s32.totalorder %s107, %s110
      %p116 = scmp.eq.s32.totalorder %s20, 0
      %p117 = por %p115, %p116
      %p118 = scmp.ne.s32.totalorder %s107, %s110
      %p119 = scmp.eq.s32.totalorder %s25, 1
      %p120 = por %p118, %p119
      %p121 = scmp.ne.s32.totalorder %s110, %s111
      %p122 = scmp.eq.s32.totalorder %s25, 0
      %p123 = por %p121, %p122
      %p124 = scmp.ne.s32.totalorder %s110, %s111
      %p125 = scmp.eq.s32.totalorder %s26, 1
      %p126 = por %p124, %p125
      %p128 = scmp.ne.s32.totalorder %s111, %s127
      %p129 = scmp.eq.s32.totalorder %s26, 0
      %p130 = por %p128, %p129
      %s131 = ssub.s32 %s27, %s39
      %s132 = ssub.s32 %s28, %s35
      %s133 = sor.u32 %s131, %s132
      %p134 = scmp.eq.s32.totalorder %s133, 0
      %s136 = sadd.s32 %s135, 1
      %s137 = scalar_select %p134, %s135, %s136
      %p140 = pneg %p134
      %p141 = scmp.eq.s32.totalorder %s20, 1
      %p142 = por %p140, %p141
      %p143 = scmp.ne.s32.totalorder %s135, %s138
      %p144 = scmp.eq.s32.totalorder %s20, 0
      %p145 = por %p143, %p144
      %p146 = scmp.ne.s32.totalorder %s135, %s138
      %p147 = scmp.eq.s32.totalorder %s25, 1
      %p148 = por %p146, %p147
      %p149 = scmp.ne.s32.totalorder %s138, %s139
      %p150 = scmp.eq.s32.totalorder %s25, 0
      %p151 = por %p149, %p150
      %p152 = scmp.ne.s32.totalorder %s138, %s139
      %p153 = scmp.eq.s32.totalorder %s26, 1
      %p154 = por %p152, %p153
      %p156 = scmp.ne.s32.totalorder %s139, %s155
      %p157 = scmp.eq.s32.totalorder %s26, 0
      %p158 = por %p156, %p157
      %s159 = ssub.s32 %s27, %s39
      %s160 = ssub.s32 %s28, %s35
      %s161 = sor.u32 %s159, %s160
      %p162 = scmp.eq.s32.totalorder %s161, 0
      %s164 = sadd.s32 %s163, 1
      %s165 = scalar_select %p162, %s163, %s164
      %p168 = pneg %p162
      %p169 = scmp.eq.s32.totalorder %s20, 1
      %p170 = por %p168, %p169
      %p171 = scmp.ne.s32.totalorder %s163, %s166
      %p172 = scmp.eq.s32.totalorder %s20, 0
      %p173 = por %p171, %p172
      %p174 = scmp.ne.s32.totalorder %s163, %s166
      %p175 = scmp.eq.s32.totalorder %s25, 1
      %p176 = por %p174, %p175
      %p177 = scmp.ne.s32.totalorder %s166, %s167
      %p178 = scmp.eq.s32.totalorder %s25, 0
      %p179 = por %p177, %p178
      %p180 = scmp.ne.s32.totalorder %s166, %s167
      %p181 = scmp.eq.s32.totalorder %s26, 1
      %p182 = por %p180, %p181
      %p184 = scmp.ne.s32.totalorder %s167, %s183
      %p185 = scmp.eq.s32.totalorder %s26, 0
      %p186 = por %p184, %p185
      %s187 = ssub.s32 %s27, %s39
      %s188 = ssub.s32 %s28, %s35
      %s189 = sor.u32 %s187, %s188
      %p190 = scmp.eq.s32.totalorder %s189, 0
      %s192 = sadd.s32 %s191, 1
      %s193 = scalar_select %p190, %s191, %s192
      %p196 = pneg %p190
      %p197 = scmp.eq.s32.totalorder %s20, 1
      %p198 = por %p196, %p197
      %p199 = scmp.ne.s32.totalorder %s191, %s194
      %p200 = scmp.eq.s32.totalorder %s20, 0
      %p201 = por %p199, %p200
      %p202 = scmp.ne.s32.totalorder %s191, %s194
      %p203 = scmp.eq.s32.totalorder %s25, 1
      %p204 = por %p202, %p203
      %p205 = scmp.ne.s32.totalorder %s194, %s195
      %p206 = scmp.eq.s32.totalorder %s25, 0
      %p207 = por %p205, %p206
      %p208 = scmp.ne.s32.totalorder %s194, %s195
      %p209 = scmp.eq.s32.totalorder %s26, 1
      %p210 = por %p208, %p209
      %p212 = scmp.ne.s32.totalorder %s195, %s211
      %p213 = scmp.eq.s32.totalorder %s26, 0
      %p214 = por %p212, %p213
      %s215 = ssub.s32 %s27, %s39
      %s216 = ssub.s32 %s28, %s35
      %s217 = sor.u32 %s215, %s216
      %p218 = scmp.eq.s32.totalorder %s217, 0
      %s220 = sadd.s32 %s219, 1
      %s221 = scalar_select %p218, %s219, %s220
      %p224 = pneg %p218
      %p225 = scmp.eq.s32.totalorder %s20, 1
      %p226 = por %p224, %p225
      %p227 = scmp.ne.s32.totalorder %s219, %s222
      %p228 = scmp.eq.s32.totalorder %s20, 0
      %p229 = por %p227, %p228
      %p230 = scmp.ne.s32.totalorder %s219, %s222
      %p231 = scmp.eq.s32.totalorder %s25, 1
      %p232 = por %p230, %p231
      %p233 = scmp.ne.s32.totalorder %s222, %s223
      %p234 = scmp.eq.s32.totalorder %s25, 0
      %p235 = por %p233, %p234
      %p236 = scmp.ne.s32.totalorder %s222, %s223
      %p237 = scmp.eq.s32.totalorder %s26, 1
      %p238 = por %p236, %p237
      %p240 = scmp.ne.s32.totalorder %s223, %s239
      %p241 = scmp.eq.s32.totalorder %s26, 0
      %p242 = por %p240, %p241
      %p243 = scmp.le.s32.totalorder 1, %s20
      %p244 = scmp.lt.s32.totalorder %s20, 3
      %p245 = pnand %p243, %p244
      %p246 = pneg %p245
      // Predicated region
      $region9: #{tpu_custom_call.1} parent=5 // pred_check
        _
      $region10: #{tpu_custom_call.1} parent=5 // pred_check_branch
        %248 = sbr.rel (%p245) target = $region12
      $region11: #{tpu_custom_call.1} parent=5 // pred_region
        %s249 = ssub.s32 %s20, 1
        // Predicated region
        $region13: #{tpu_custom_call.1} parent=11 // pred_check
          %p250 = pneg %p53
        $region14: #{tpu_custom_call.1} parent=11 // pred_check_branch
          %252 = sbr.rel (%p250) target = $region16
        $region15: #{tpu_custom_call.1} parent=11 // pred_region
          _
        $region16: #{tpu_custom_call.1} parent=11 // pred_fallthru
          _
        // Predicated region
        $region17: #{tpu_custom_call.1} parent=11 // pred_check
          %p253 = pneg %p74
        $region18: #{tpu_custom_call.1} parent=11 // pred_check_branch
          %255 = sbr.rel (%p253) target = $region20
        $region19: #{tpu_custom_call.1} parent=11 // pred_region
          _
        $region20: #{tpu_custom_call.1} parent=11 // pred_fallthru
          _
        // Predicated region
        $region21: #{tpu_custom_call.1} parent=11 // pred_check
          %p256 = pneg %p95
        $region22: #{tpu_custom_call.1} parent=11 // pred_check_branch
          %258 = sbr.rel (%p256) target = $region24
        $region23: #{tpu_custom_call.1} parent=11 // pred_region
          _
        $region24: #{tpu_custom_call.1} parent=11 // pred_fallthru
          _
      $region12: #{tpu_custom_call.1} parent=5 // pred_fallthru
        _
      %p259 = scmp.lt.s32.totalorder %s20, 2
      // Predicated region
      $region25: #{tpu_custom_call.1} parent=5 // pred_check
        %p260 = pneg %p259
      $region26: #{tpu_custom_call.1} parent=5 // pred_check_branch
        %262 = sbr.rel (%p260) target = $region28
      $region27: #{tpu_custom_call.1} parent=5 // pred_region
        // Predicated region
        $region29: #{tpu_custom_call.1} parent=27 // pred_check
          %p263 = pneg %p117
        $region30: #{tpu_custom_call.1} parent=27 // pred_check_branch
          %265 = sbr.rel (%p263) target = $region32
        $region31: #{tpu_custom_call.1} parent=27 // pred_region
          %s266 = smul.u32 2, %s28
          %p267 = scmp.lt.s32.totalorder %s27, 1
          %s268 = scalar_select %p267, %s27, 1
          %p269 = scmp.lt.s32.totalorder %s266, 1
          %s270 = scalar_select %p269, %s266, 1
          %s271 = smul.addr %s268, 2
          %s272 = sadd.s32 %s270, %s271
          %s273 = smul.addr %s272, 2
          %s274 = scalar_lea.vmem %s3, %s273
          %s275 = smul.u32 2, %s28
        $region32: #{tpu_custom_call.1} parent=27 // pred_fallthru
          _
        // Predicated region
        $region33: #{tpu_custom_call.1} parent=27 // pred_check
          %p276 = pneg %p145
        $region34: #{tpu_custom_call.1} parent=27 // pred_check_branch
          %278 = sbr.rel (%p276) target = $region36
        $region35: #{tpu_custom_call.1} parent=27 // pred_region
          %s279 = smul.u32 2, %s28
          %p280 = scmp.lt.s32.totalorder %s27, 1
          %s281 = scalar_select %p280, %s27, 1
          %p282 = scmp.lt.s32.totalorder %s279, 1
          %s283 = scalar_select %p282, %s279, 1
          %s284 = smul.addr %s281, 2
          %s285 = sadd.s32 %s283, %s284
          %s286 = smul.addr %s285, 2
          %s287 = scalar_lea.vmem %s4, %s286
          %s288 = smul.u32 2, %s28
        $region36: #{tpu_custom_call.1} parent=27 // pred_fallthru
          _
      $region28: #{tpu_custom_call.1} parent=5 // pred_fallthru
        _
      %p289 = scmp.le.s32.totalorder 1, %s20
      %p290 = scmp.lt.s32.totalorder %s20, 3
      %p291 = pnand %p289, %p290
      %p292 = pneg %p291
      // Predicated region
      $region37: #{tpu_custom_call.1} parent=5 // pred_check
        _
      $region38: #{tpu_custom_call.1} parent=5 // pred_check_branch
        %294 = sbr.rel (%p291) target = $region40
      $region39: #{tpu_custom_call.1} parent=5 // pred_region
        %s295 = ssub.s32 %s20, 1
        %p296 = pneg %p53
        %p297 = pneg %p50
        %p298 = pneg %p74
        %p299 = pneg %p71
        %p300 = pneg %p95
        %p301 = pneg %p92
        %s302 = smul.u32 2, %s30
        %p303 = scmp.lt.s32.totalorder %s29, 1
        %s304 = scalar_select %p303, %s29, 1
        %p305 = scmp.lt.s32.totalorder %s302, 1
        %s306 = scalar_select %p305, %s302, 1
        %s307 = smul.addr %s304, 2
        %s308 = sadd.s32 %s306, %s307
        %s309 = smul.addr %s308, 2
        %s310 = scalar_lea.vmem %s3, %s309
        %p311 = pneg %p123
        %p312 = pneg %p120
        %s313 = smul.u32 2, %s30
        %p314 = scmp.lt.s32.totalorder %s29, 1
        %s315 = scalar_select %p314, %s29, 1
        %p316 = scmp.lt.s32.totalorder %s313, 1
        %s317 = scalar_select %p316, %s313, 1
        %s318 = smul.addr %s315, 2
        %s319 = sadd.s32 %s317, %s318
        %s320 = smul.addr %s319, 2
        %s321 = scalar_lea.vmem %s4, %s320
        %p322 = pneg %p151
        %p323 = pneg %p148
        %p324 = pneg %p179
        %p325 = pneg %p176
        %s326 = sand.u32 %s166, 1
        %s327 = scalar_lea.sflag [#allocation3], %s326
        %s328 = sand.u32 %s166, 1
        %s329 = smul.addr %s328, 2
        %s330 = scalar_lea.vmem [#allocation2], %s329
        %p331 = pneg %p207
        %p332 = pneg %p204
        %s333 = sand.u32 %s25, 1
        %s334 = scalar_lea.sflag [#allocation5], %s333
        %s335 = sand.u32 %s194, 1
        %s336 = smul.addr %s335, 2
        %s337 = scalar_lea.vmem [#allocation4], %s336
        %p338 = pneg %p235
        %p339 = pneg %p232
        %s340 = sand.u32 %s25, 1
        %s341 = scalar_lea.sflag [#allocation5], %s340
        %s342 = sand.u32 %s222, 1
        %s343 = smul.addr %s342, 2
        %s344 = scalar_lea.vmem [#allocation6], %s343
        %s345 = smul.u32 2, %s30
        %p346 = scmp.lt.s32.totalorder %s29, 1
        %s347 = scalar_select %p346, %s29, 1
        %p348 = scmp.lt.s32.totalorder %s345, 1
        %s349 = scalar_select %p348, %s345, 1
        %s350 = smul.addr %s347, 2
        %s351 = sadd.s32 %s349, %s350
        %s352 = smul.addr %s351, 2
        %s353 = scalar_lea.vmem %s3, %s352
        %s354 = smul.u32 2, %s30
        %s355 = smul.u32 2, %s30
        %p356 = scmp.lt.s32.totalorder %s29, 1
        %s357 = scalar_select %p356, %s29, 1
        %p358 = scmp.lt.s32.totalorder %s355, 1
        %s359 = scalar_select %p358, %s355, 1
        %s360 = smul.addr %s357, 2
        %s361 = sadd.s32 %s359, %s360
        %s362 = smul.addr %s361, 2
        %s363 = scalar_lea.vmem %s4, %s362
        %s364 = smul.u32 2, %s30
        %s365 = smul.u32 2, %s30
        %s366 = smul.u32 2, %s30
        %s367 = smul.u32 2, %s30
        %v369 = vld [vmem:[%s353] sm:$0xf]
        %v370 = vld [vmem:[%s363] sm:$0xf]
        %v373 = vunpack.c.l.s4 1983009808
        %v374 = vunpack.c.0.s8 %v373
        %v375 = vlaneseq
        %v376 = vshrl.u32 %v375, 7
        %v377 = vsub.s32 %v374, %v376
        %v378 = vrot.slane %v369, %v377
        %v379 = vcombine.high %v378, %v378
        %v382 = vunpack.c.l.s4 1983009808
        %v383 = vunpack.c.0.s8 %v382
        %v384 = vlaneseq
        %v385 = vshrl.u32 %v384, 7
        %v386 = vsub.s32 %v383, %v385
        %v387 = vrot.slane %v370, %v386
        %v388 = vcombine.high %v387, %v387
        %v389 = vld [vmem:[%s0] sm:$0xf]
        %v390 = vld [vmem:[%s0 + $0x4] sm:$0xf]
        %v393 = vunpack.c.l.b16 %v389
        %v394 = vunpack.c.l.b16 %v390
        %v395 = vpack.c.b16 %v394, %v393
        %vm396 = vcmask 23552
        %v398 = vsel %vm396, %v395, 0
        %vm400 = vcmask 1040384
        %vm401 = vcmask 1041408
        %v402 = vsel %vm400, 4294967295, 65535
        %v403 = vsel %vm401, %v402, 0
        %v405 = vand.u32 %v378, %v403
        %v408 = vand.u32 %v379, %v403
        %v411 = vand.u32 %v387, %v403
        %v414 = vand.u32 %v388, %v403
        %416 = vmatprep.subr.bf16.mxu0 0
        %417 = vmatpush1.bf16.msra.mxu0 0
        %418 = vmatprep.subr.bf16.mxu0 0
        %419 = vmatpush1.bf16.msra.mxu0 0
        %420 = vmatprep.subr.bf16.mxu0 0
        %421 = vmatpush1.bf16.msra.mxu0 0
        %422 = vmatprep.subr.bf16.mxu0 0
        %423 = vmatpush1.bf16.msra.mxu0 0
        %424 = vmatprep.subr.bf16.mxu0 0
        %425 = vmatpush1.bf16.msra.mxu0 0
        %426 = vmatprep.subr.bf16.mxu0 0
        %427 = vmatpush1.bf16.msra.mxu0 0
        %428 = vmatprep.subr.bf16.mxu0 0
        %429 = vmatpush1.bf16.msra.mxu0 0
        %430 = vmatprep.subr.bf16.mxu0 %v408
        %431 = vmatpush1.bf16.msra.mxu0 %v405
        %432 = vmatprep.subr.bf16.mxu0 0
        %433 = vmatpush2.bf16.msra.mxu0 0
        %434 = vmatprep.subr.bf16.mxu0 0
        %435 = vmatpush2.bf16.msra.mxu0 0
        %436 = vmatprep.subr.bf16.mxu0 0
        %437 = vmatpush2.bf16.msra.mxu0 0
        %438 = vmatprep.subr.bf16.mxu0 0
        %439 = vmatpush2.bf16.msra.mxu0 0
        %440 = vmatprep.subr.bf16.mxu0 0
        %441 = vmatpush2.bf16.msra.mxu0 0
        %442 = vmatprep.subr.bf16.mxu0 0
        %443 = vmatpush2.bf16.msra.mxu0 0
        %444 = vmatprep.subr.bf16.mxu0 0
        %445 = vmatpush2.bf16.msra.mxu0 0
        %446 = vmatprep.subr.bf16.mxu0 0
        %447 = vmatpush2.bf16.msra.mxu0 0
        %448 = vmatprep.mubr.bf16.mxu0 0
        %449 = vmatmul.mubr.bf16.gmra.mxu0 %v398
        %v450 = vpop.f32.mrf.mxu0
        %v451 = vadd.f32 0.0, %v450
        %v452 = vpop.f32.mrf.mxu0
        %v453 = vadd.f32 0.0, %v452
        %v454 = vpop.f32.mrf.mxu0
        %v455 = vadd.f32 0.0, %v454
        %v456 = vpop.f32.mrf.mxu0
        %v457 = vadd.f32 0.0, %v456
        %458 = vdwg.mxu0
        %459 = vmatprep.subr.bf16.mxu0 0
        %460 = vmatpush1.bf16.msra.mxu0 0
        %461 = vmatprep.subr.bf16.mxu0 0
        %462 = vmatpush1.bf16.msra.mxu0 0
        %463 = vmatprep.subr.bf16.mxu0 0
        %464 = vmatpush1.bf16.msra.mxu0 0
        %465 = vmatprep.subr.bf16.mxu0 0
        %466 = vmatpush1.bf16.msra.mxu0 0
        %467 = vmatprep.subr.bf16.mxu0 0
        %468 = vmatpush1.bf16.msra.mxu0 0
        %469 = vmatprep.subr.bf16.mxu0 0
        %470 = vmatpush1.bf16.msra.mxu0 0
        %471 = vmatprep.subr.bf16.mxu0 0
        %472 = vmatpush1.bf16.msra.mxu0 0
        %473 = vmatprep.subr.bf16.mxu0 %v414
        %474 = vmatpush1.bf16.msra.mxu0 %v411
        %475 = vmatprep.subr.bf16.mxu0 0
        %476 = vmatpush2.bf16.msra.mxu0 0
        %477 = vmatprep.subr.bf16.mxu0 0
        %478 = vmatpush2.bf16.msra.mxu0 0
        %479 = vmatprep.subr.bf16.mxu0 0
        %480 = vmatpush2.bf16.msra.mxu0 0
        %481 = vmatprep.subr.bf16.mxu0 0
        %482 = vmatpush2.bf16.msra.mxu0 0
        %483 = vmatprep.subr.bf16.mxu0 0
        %484 = vmatpush2.bf16.msra.mxu0 0
        %485 = vmatprep.subr.bf16.mxu0 0
        %486 = vmatpush2.bf16.msra.mxu0 0
        %487 = vmatprep.subr.bf16.mxu0 0
        %488 = vmatpush2.bf16.msra.mxu0 0
        %489 = vmatprep.subr.bf16.mxu0 0
        %490 = vmatpush2.bf16.msra.mxu0 0
        %491 = vmatprep.mubr.bf16.mxu0 0
        %492 = vmatmul.mubr.bf16.gmra.mxu0 %v398
        %v493 = vpop.f32.mrf.mxu0
        %v494 = vadd.f32 0.0, %v493
        %v495 = vpop.f32.mrf.mxu0
        %v496 = vadd.f32 0.0, %v495
        %v497 = vpop.f32.mrf.mxu0
        %v498 = vadd.f32 0.0, %v497
        %v499 = vpop.f32.mrf.mxu0
        %v500 = vadd.f32 0.0, %v499
        %501 = vdwg.mxu0
        %v502 = vmax.f32 %v451, 0.0
        %v503 = vmax.f32 %v453, 0.0
        %v504 = vmax.f32 %v494, 0.0
        %v505 = vmax.f32 %v496, 0.0
        %v506 = vmax.f32 %v455, 0.0
        %v507 = vmax.f32 %v457, 0.0
        %v508 = vmax.f32 %v498, 0.0
        %v509 = vmax.f32 %v500, 0.0
        %v510 = vmul.f32 %v502, %v504
        %v511 = vmul.f32 %v503, %v505
        %v512 = vmul.f32 %v506, %v508
        %v513 = vmul.f32 %v507, %v509
        %v514 = vpack.c.bf16 %v512, %v510
        %v515 = vpack.c.bf16 %v513, %v511
        %v516 = vld [vmem:[%s1] sm:$0xf]
        %v517 = vld [vmem:[%s1 + $0x4] sm:$0xf]
        %v518 = vld [vmem:[%s1 + $0x8] sm:$0xf]
        %v519 = vld [vmem:[%s1 + $0xc] sm:$0xf]
        %v520 = vld [vmem:[%s1 + $0x10] sm:$0xf]
        %v521 = vld [vmem:[%s1 + $0x14] sm:$0xf]
        %v522 = vld [vmem:[%s1 + $0x18] sm:$0xf]
        %v523 = vld [vmem:[%s1 + $0x1c] sm:$0xf]
        %v532 = vunpack.c.l.b16 %v516
        %v533 = vunpack.c.l.b16 %v517
        %v534 = vunpack.c.l.b16 %v518
        %v535 = vunpack.c.l.b16 %v519
        %v536 = vunpack.c.l.b16 %v520
        %v537 = vunpack.c.l.b16 %v521
        %v538 = vunpack.c.l.b16 %v522
        %v539 = vunpack.c.l.b16 %v523
        %v540 = vpack.c.b16 %v533, %v532
        %v541 = vpack.c.b16 %v535, %v534
        %v542 = vpack.c.b16 %v537, %v536
        %v543 = vpack.c.b16 %v539, %v538
        %vm544 = vcmask 130048
        %v546 = vsel %vm544, %v540, 0
        %v549 = vsel %vm544, %v541, 0
        %v552 = vsel %vm544, %v542, 0
        %v555 = vsel %vm544, %v543, 0
        %557 = vmatprep.subr.bf16.mxu0 0
        %558 = vmatpush1.bf16.msra.mxu0 0
        %559 = vmatprep.subr.bf16.mxu0 0
        %560 = vmatpush1.bf16.msra.mxu0 0
        %561 = vmatprep.subr.bf16.mxu0 0
        %562 = vmatpush1.bf16.msra.mxu0 0
        %563 = vmatprep.subr.bf16.mxu0 0
        %564 = vmatpush1.bf16.msra.mxu0 0
        %565 = vmatprep.subr.bf16.mxu0 0
        %566 = vmatpush1.bf16.msra.mxu0 0
        %567 = vmatprep.subr.bf16.mxu0 0
        %568 = vmatpush1.bf16.msra.mxu0 0
        %569 = vmatprep.subr.bf16.mxu0 0
        %570 = vmatpush1.bf16.msra.mxu0 0
        %571 = vmatprep.subr.bf16.mxu0 %v515
        %572 = vmatpush1.bf16.msra.mxu0 %v514
        %573 = vmatprep.subr.bf16.mxu0 0
        %574 = vmatpush2.bf16.msra.mxu0 0
        %575 = vmatprep.subr.bf16.mxu0 0
        %576 = vmatpush2.bf16.msra.mxu0 0
        %577 = vmatprep.subr.bf16.mxu0 0
        %578 = vmatpush2.bf16.msra.mxu0 0
        %579 = vmatprep.subr.bf16.mxu0 0
        %580 = vmatpush2.bf16.msra.mxu0 0
        %581 = vmatprep.subr.bf16.mxu0 0
        %582 = vmatpush2.bf16.msra.mxu0 0
        %583 = vmatprep.subr.bf16.mxu0 0
        %584 = vmatpush2.bf16.msra.mxu0 0
        %585 = vmatprep.subr.bf16.mxu0 0
        %586 = vmatpush2.bf16.msra.mxu0 0
        %587 = vmatprep.subr.bf16.mxu0 0
        %588 = vmatpush2.bf16.msra.mxu0 0
        %589 = vmatprep.mubr.bf16.mxu0 0
        %590 = vmatmul.mubr.bf16.gmra.mxu0 %v546
        %v591 = vpop.f32.mrf.mxu0
        %v592 = vadd.f32 0.0, %v591
        %v593 = vpop.f32.mrf.mxu0
        %v594 = vadd.f32 0.0, %v593
        %v595 = vpop.f32.mrf.mxu0
        %v596 = vadd.f32 0.0, %v595
        %v597 = vpop.f32.mrf.mxu0
        %v598 = vadd.f32 0.0, %v597
        %599 = vmatprep.mubr.bf16.mxu0 0
        %600 = vmatmul.mubr.bf16.gmra.mxu0 %v549
        %v601 = vpop.f32.mrf.mxu0
        %v602 = vadd.f32 0.0, %v601
        %v603 = vpop.f32.mrf.mxu0
        %v604 = vadd.f32 0.0, %v603
        %v605 = vpop.f32.mrf.mxu0
        %v606 = vadd.f32 0.0, %v605
        %v607 = vpop.f32.mrf.mxu0
        %v608 = vadd.f32 0.0, %v607
        %609 = vmatprep.mubr.bf16.mxu0 0
        %610 = vmatmul.mubr.bf16.gmra.mxu0 %v552
        %v611 = vpop.f32.mrf.mxu0
        %v612 = vadd.f32 0.0, %v611
        %v613 = vpop.f32.mrf.mxu0
        %v614 = vadd.f32 0.0, %v613
        %v615 = vpop.f32.mrf.mxu0
        %v616 = vadd.f32 0.0, %v615
        %v617 = vpop.f32.mrf.mxu0
        %v618 = vadd.f32 0.0, %v617
        %619 = vmatprep.mubr.bf16.mxu0 0
        %620 = vmatmul.mubr.bf16.gmra.mxu0 %v555
        %v621 = vpop.f32.mrf.mxu0
        %v622 = vadd.f32 0.0, %v621
        %v623 = vpop.f32.mrf.mxu0
        %v624 = vadd.f32 0.0, %v623
        %v625 = vpop.f32.mrf.mxu0
        %v626 = vadd.f32 0.0, %v625
        %v627 = vpop.f32.mrf.mxu0
        %v628 = vadd.f32 0.0, %v627
        %629 = vdwg.mxu0
        %v630 = vmin.f32 %v592, %v602
        %v631 = vmin.f32 %v596, %v606
        %v632 = vmin.f32 %v630, %v612
        %v633 = vmin.f32 %v631, %v616
        %v634 = vmin.f32 %v632, %v622
        %v635 = vmin.f32 %v633, %v626
        %v636 = vmin.f32 %v634, %v635
        %v637 = vrot.slane %v636, 4
        %v638 = vmin.f32 %v636, %v637
        %v639 = vrot.slane %v638, 2
        %v640 = vmin.f32 %v638, %v639
        %v641 = vrot.slane %v640, 1
        %v642 = vmin.f32 %v640, %v641
        %v643 = vmin.f32 %v594, %v604
        %v644 = vmin.f32 %v598, %v608
        %v645 = vmin.f32 %v643, %v614
        %v646 = vmin.f32 %v644, %v618
        %v647 = vmin.f32 %v645, %v624
        %v648 = vmin.f32 %v646, %v628
        %v649 = vmin.f32 %v647, %v648
        %v650 = vrot.slane %v649, 4
        %v651 = vmin.f32 %v649, %v650
        %v652 = vrot.slane %v651, 2
        %v653 = vmin.f32 %v651, %v652
        %v654 = vrot.slane %v653, 1
        %v655 = vmin.f32 %v653, %v654
        %v656 = vlaneseq
        %v657 = vshrl.u32 %v656, 7
        %v658 = vadd.s32 %v657, 8
        %v659 = vadd.s32 %v657, 16
        %v660 = vadd.s32 %v657, 24
        %v661 = vadd.s32 %v657, 32
        %v662 = vadd.s32 %v657, 40
        %v663 = vadd.s32 %v657, 48
        %v664 = vadd.s32 %v657, 56
        %vm665 = vcmp.le.f32.partialorder %v592, %v642
        %vm666 = vcmp.le.f32.partialorder %v594, %v655
        %vm667 = vcmp.le.f32.partialorder %v596, %v642
        %vm668 = vcmp.le.f32.partialorder %v598, %v655
        %vm669 = vcmp.le.f32.partialorder %v602, %v642
        %vm670 = vcmp.le.f32.partialorder %v604, %v655
        %vm671 = vcmp.le.f32.partialorder %v606, %v642
        %vm672 = vcmp.le.f32.partialorder %v608, %v655
        %vm673 = vcmp.le.f32.partialorder %v612, %v642
        %vm674 = vcmp.le.f32.partialorder %v614, %v655
        %vm675 = vcmp.le.f32.partialorder %v616, %v642
        %vm676 = vcmp.le.f32.partialorder %v618, %v655
        %vm677 = vcmp.le.f32.partialorder %v622, %v642
        %vm678 = vcmp.le.f32.partialorder %v624, %v655
        %vm679 = vcmp.le.f32.partialorder %v626, %v642
        %vm680 = vcmp.le.f32.partialorder %v628, %v655
        %v681 = vsel %vm665, %v657, 64
        %v682 = vsel %vm666, %v657, 64
        %v683 = vsel %vm667, %v658, 64
        %v684 = vsel %vm668, %v658, 64
        %v685 = vsel %vm669, %v659, 64
        %v686 = vsel %vm670, %v659, 64
        %v687 = vsel %vm671, %v660, 64
        %v688 = vsel %vm672, %v660, 64
        %v689 = vsel %vm673, %v661, 64
        %v690 = vsel %vm674, %v661, 64
        %v691 = vsel %vm675, %v662, 64
        %v692 = vsel %vm676, %v662, 64
        %v693 = vsel %vm677, %v663, 64
        %v694 = vsel %vm678, %v663, 64
        %v695 = vsel %vm679, %v664, 64
        %v696 = vsel %vm680, %v664, 64
        %vm697 = vcmp.lt.s32.totalorder %v681, %v685
        %v698 = vsel %vm697, %v681, %v685
        %vm699 = vcmp.lt.s32.totalorder %v683, %v687
        %v700 = vsel %vm699, %v683, %v687
        %vm701 = vcmp.lt.s32.totalorder %v698, %v689
        %v702 = vsel %vm701, %v698, %v689
        %vm703 = vcmp.lt.s32.totalorder %v700, %v691
        %v704 = vsel %vm703, %v700, %v691
        %vm705 = vcmp.lt.s32.totalorder %v702, %v693
        %v706 = vsel %vm705, %v702, %v693
        %vm707 = vcmp.lt.s32.totalorder %v704, %v695
        %v708 = vsel %vm707, %v704, %v695
        %vm709 = vcmp.lt.s32.totalorder %v706, %v708
        %v710 = vsel %vm709, %v706, %v708
        %v711 = vrot.slane %v710, 4
        %vm712 = vcmp.lt.s32.totalorder %v710, %v711
        %v713 = vsel %vm712, %v710, %v711
        %v714 = vrot.slane %v713, 2
        %vm715 = vcmp.lt.s32.totalorder %v713, %v714
        %v716 = vsel %vm715, %v713, %v714
        %v717 = vrot.slane %v716, 1
        %vm718 = vcmp.lt.s32.totalorder %v716, %v717
        %v719 = vsel %vm718, %v716, %v717
        %vm720 = vcmp.lt.s32.totalorder %v682, %v686
        %v721 = vsel %vm720, %v682, %v686
        %vm722 = vcmp.lt.s32.totalorder %v684, %v688
        %v723 = vsel %vm722, %v684, %v688
        %vm724 = vcmp.lt.s32.totalorder %v721, %v690
        %v725 = vsel %vm724, %v721, %v690
        %vm726 = vcmp.lt.s32.totalorder %v723, %v692
        %v727 = vsel %vm726, %v723, %v692
        %vm728 = vcmp.lt.s32.totalorder %v725, %v694
        %v729 = vsel %vm728, %v725, %v694
        %vm730 = vcmp.lt.s32.totalorder %v727, %v696
        %v731 = vsel %vm730, %v727, %v696
        %vm732 = vcmp.lt.s32.totalorder %v729, %v731
        %v733 = vsel %vm732, %v729, %v731
        %v734 = vrot.slane %v733, 4
        %vm735 = vcmp.lt.s32.totalorder %v733, %v734
        %v736 = vsel %vm735, %v733, %v734
        %v737 = vrot.slane %v736, 2
        %vm738 = vcmp.lt.s32.totalorder %v736, %v737
        %v739 = vsel %vm738, %v736, %v737
        %v740 = vrot.slane %v739, 1
        %vm741 = vcmp.lt.s32.totalorder %v739, %v740
        %v742 = vsel %vm741, %v739, %v740
        %v743 = vcvt.s32.f32 %v719
        %v744 = vcvt.s32.f32 %v742
        %v747 = vcombine.low %v743, %v744
        %v749 = vunpack.c.l.s4 1966171168
        %v750 = vunpack.c.0.s8 %v749
        %v751 = vlaneseq
        %v752 = vshrl.u32 %v751, 7
        %v753 = vsub.s32 %v750, %v752
        %v754 = vrot.slane %v747, %v753
        %v756 = vunpack.c.l.s4 1966171168
        %v757 = vunpack.c.0.s8 %v756
        %v758 = vlaneseq
        %v759 = vshrl.u32 %v758, 7
        %v760 = vsub.s32 %v757, %v759
        %v761 = vrot.slane %v754, %v760
        %v763 = vlaneseq
        %vm764 = vcmp.ge.s32.totalorder %v763, 0
        %vm765 = vcmp.lt.s32.totalorder %v763, 256
        %vm766 = vmand %vm764, %vm765
        %767 = vst.msk [vmem:[%s344] sm:$0x3] %vm766, %v761
        %v768 = vld [vmem:[%s2] sm:$0xff]
        %v769 = vld [vmem:[%s2 + $0x8] sm:$0xff]
        %v770 = vld [vmem:[%s2 + $0x10] sm:$0xff]
        %v771 = vld [vmem:[%s2 + $0x18] sm:$0xff]
        %v772 = vld [vmem:[%s2 + $0x20] sm:$0xff]
        %v773 = vld [vmem:[%s2 + $0x28] sm:$0xff]
        %v774 = vld [vmem:[%s2 + $0x30] sm:$0xff]
        %v775 = vld [vmem:[%s2 + $0x38] sm:$0xff]
        %777 = vset.pattern.permute.xlu0 0
        %778 = vperm.xlu0 %777, %v768
        %v779 = vpop.permute.xlu0 %778
        %782 = vset.pattern.permute.xlu0 0
        %783 = vperm.xlu0 %782, %v769
        %v784 = vpop.permute.xlu0 %783
        %787 = vset.pattern.permute.xlu0 0
        %788 = vperm.xlu0 %787, %v770
        %v789 = vpop.permute.xlu0 %788
        %792 = vset.pattern.permute.xlu0 0
        %793 = vperm.xlu0 %792, %v771
        %v794 = vpop.permute.xlu0 %793
        %797 = vset.pattern.permute.xlu0 0
        %798 = vperm.xlu0 %797, %v772
        %v799 = vpop.permute.xlu0 %798
        %802 = vset.pattern.permute.xlu0 0
        %803 = vperm.xlu0 %802, %v773
        %v804 = vpop.permute.xlu0 %803
        %807 = vset.pattern.permute.xlu0 0
        %808 = vperm.xlu0 %807, %v774
        %v809 = vpop.permute.xlu0 %808
        %812 = vset.pattern.permute.xlu0 0
        %813 = vperm.xlu0 %812, %v775
        %v814 = vpop.permute.xlu0 %813
        %v816 = vmul.f32 %v779, %v592
        %v817 = vmul.f32 %v779, %v594
        %v818 = vmul.f32 %v784, %v596
        %v819 = vmul.f32 %v784, %v598
        %v820 = vmul.f32 %v789, %v602
        %v821 = vmul.f32 %v789, %v604
        %v822 = vmul.f32 %v794, %v606
        %v823 = vmul.f32 %v794, %v608
        %v824 = vmul.f32 %v799, %v612
        %v825 = vmul.f32 %v799, %v614
        %v826 = vmul.f32 %v804, %v616
        %v827 = vmul.f32 %v804, %v618
        %v828 = vmul.f32 %v809, %v622
        %v829 = vmul.f32 %v809, %v624
        %v830 = vmul.f32 %v814, %v626
        %v831 = vmul.f32 %v814, %v628
        %v832 = vadd.f32 %v816, %v818
        %v833 = vadd.f32 %v832, %v820
        %v834 = vadd.f32 %v833, %v822
        %v835 = vadd.f32 %v834, %v824
        %v836 = vadd.f32 %v835, %v826
        %v837 = vadd.f32 %v836, %v828
        %v838 = vadd.f32 %v837, %v830
        %v839 = vrot.slane %v838, 4
        %v840 = vadd.f32 %v838, %v839
        %v841 = vrot.slane %v840, 2
        %v842 = vadd.f32 %v840, %v841
        %v843 = vrot.slane %v842, 1
        %v844 = vadd.f32 %v842, %v843
        %v845 = vadd.f32 %v817, %v819
        %v846 = vadd.f32 %v845, %v821
        %v847 = vadd.f32 %v846, %v823
        %v848 = vadd.f32 %v847, %v825
        %v849 = vadd.f32 %v848, %v827
        %v850 = vadd.f32 %v849, %v829
        %v851 = vadd.f32 %v850, %v831
        %v852 = vrot.slane %v851, 4
        %v853 = vadd.f32 %v851, %v852
        %v854 = vrot.slane %v853, 2
        %v855 = vadd.f32 %v853, %v854
        %v856 = vrot.slane %v855, 1
        %v857 = vadd.f32 %v855, %v856
        %v858 = vsub.f32 0.0, %v844
        %v859 = vsub.f32 0.0, %v857
        %v860 = vmul.f32 %v858, 1.442695
        %v861 = vpow.pop %v860
        %v862 = vmul.f32 %v859, 1.442695
        %v863 = vpow.pop %v862
        %v864 = vadd.f32 %v861, 1.0
        %v865 = vadd.f32 %v863, 1.0
        %v866 = vrcp.pop %v864
        %v867 = vmul.f32 1.0, %v866
        %v868 = vrcp.pop %v865
        %v869 = vmul.f32 1.0, %v868
        %v870 = vmul.f32 %v867, 9.9
        %v871 = vmul.f32 %v869, 9.9
        %v872 = vadd.f32 %v870, 0.1
        %v873 = vadd.f32 %v871, 0.1
        %v874 = vrcp.pop %v872
        %v875 = vmul.f32 1.0, %v874
        %v876 = vrcp.pop %v873
        %v877 = vmul.f32 1.0, %v876
        %v880 = vcombine.low %v875, %v877
        %v882 = vunpack.c.l.s4 1966171168
        %v883 = vunpack.c.0.s8 %v882
        %v884 = vlaneseq
        %v885 = vshrl.u32 %v884, 7
        %v886 = vsub.s32 %v883, %v885
        %v887 = vrot.slane %v880, %v886
        %v889 = vunpack.c.l.s4 1966171168
        %v890 = vunpack.c.0.s8 %v889
        %v891 = vlaneseq
        %v892 = vshrl.u32 %v891, 7
        %v893 = vsub.s32 %v890, %v892
        %v894 = vrot.slane %v887, %v893
        %896 = vst.msk [vmem:[%s330] sm:$0x3] %vm766, %v894
        %v899 = vcombine.low %v872, %v873
        %v901 = vunpack.c.l.s4 1966171168
        %v902 = vunpack.c.0.s8 %v901
        %v903 = vlaneseq
        %v904 = vshrl.u32 %v903, 7
        %v905 = vsub.s32 %v902, %v904
        %v906 = vrot.slane %v899, %v905
        %v908 = vunpack.c.l.s4 1966171168
        %v909 = vunpack.c.0.s8 %v908
        %v910 = vlaneseq
        %v911 = vshrl.u32 %v910, 7
        %v912 = vsub.s32 %v909, %v911
        %v913 = vrot.slane %v906, %v912
        %915 = vst.msk [vmem:[%s337] sm:$0x3] %vm766, %v913
        %s916 = sand.u32 %s166, 1
        %s917 = scalar_lea.sflag [#allocation3], %s916
        %s918 = sand.u32 %s166, 1
        %s919 = smul.addr %s918, 2
        %s920 = scalar_lea.vmem [#allocation2], %s919
        %s921 = sand.u32 %s25, 1
        %s922 = scalar_lea.sflag [#allocation5], %s921
        %s923 = sand.u32 %s194, 1
        %s924 = smul.addr %s923, 2
        %s925 = scalar_lea.vmem [#allocation4], %s924
        %s926 = sand.u32 %s25, 1
        %s927 = scalar_lea.sflag [#allocation5], %s926
        %s928 = sand.u32 %s222, 1
        %s929 = smul.addr %s928, 2
        %s930 = scalar_lea.vmem [#allocation6], %s929
        // Predicated region
        $region41: #{tpu_custom_call.1} parent=39 // pred_check
          %p931 = pneg %p176
        $region42: #{tpu_custom_call.1} parent=39 // pred_check_branch
          %933 = sbr.rel (%p931) target = $region44
        $region43: #{tpu_custom_call.1} parent=39 // pred_region
          %s934 = smul.u32 2, %s30
          %s936 = ssub.s32 32, 32
          %937 = vsyncadd %s917, %s936
          %s938 = smul.addr %s29, 2
          %s939 = sadd.s32 %s934, %s938
          %s940 = smul.addr %s939, 16
          %s941 = scalar_lea.hbm %s5, %s940
          %s943 = sshll.u32 %s920, 4
          %s944 = int_to_ptr.vmem [resolvable:$true] %s943
          %946 = dma.vmem_to_hbm [thread:$0]  %s944, 32, %s941, %s917
        $region44: #{tpu_custom_call.1} parent=39 // pred_fallthru
          _
        // Predicated region
        $region45: #{tpu_custom_call.1} parent=39 // pred_check
          %p947 = pneg %p204
        $region46: #{tpu_custom_call.1} parent=39 // pred_check_branch
          %949 = sbr.rel (%p947) target = $region48
        $region47: #{tpu_custom_call.1} parent=39 // pred_region
          %s950 = smul.u32 2, %s30
          %s952 = ssub.s32 32, 32
          %953 = vsyncadd %s922, %s952
          %s954 = smul.addr %s29, 2
          %s955 = sadd.s32 %s950, %s954
          %s956 = smul.addr %s955, 16
          %s957 = scalar_lea.hbm %s6, %s956
          %s959 = sshll.u32 %s925, 4
          %s960 = int_to_ptr.vmem [resolvable:$true] %s959
          %962 = dma.vmem_to_hbm [thread:$0]  %s960, 32, %s957, %s922
        $region48: #{tpu_custom_call.1} parent=39 // pred_fallthru
          _
        // Predicated region
        $region49: #{tpu_custom_call.1} parent=39 // pred_check
          %p963 = pneg %p232
        $region50: #{tpu_custom_call.1} parent=39 // pred_check_branch
          %965 = sbr.rel (%p963) target = $region52
        $region51: #{tpu_custom_call.1} parent=39 // pred_region
          %s966 = smul.u32 2, %s30
          %s968 = ssub.s32 32, 32
          %969 = vsyncadd %s927, %s968
          %s970 = smul.addr %s29, 2
          %s971 = sadd.s32 %s966, %s970
          %s972 = smul.addr %s971, 16
          %s973 = scalar_lea.hbm %s7, %s972
          %s975 = sshll.u32 %s930, 4
          %s976 = int_to_ptr.vmem [resolvable:$true] %s975
          %978 = dma.vmem_to_hbm [thread:$0]  %s976, 32, %s973, %s927
        $region52: #{tpu_custom_call.1} parent=39 // pred_fallthru
          _
      $region40: #{tpu_custom_call.1} parent=5 // pred_fallthru
        _
      %p979 = scmp.le.s32.totalorder 2, %s20
      // Predicated region
      $region53: #{tpu_custom_call.1} parent=5 // pred_check
        %p980 = pneg %p979
      $region54: #{tpu_custom_call.1} parent=5 // pred_check_branch
        %982 = sbr.rel (%p980) target = $region56
      $region55: #{tpu_custom_call.1} parent=5 // pred_region
        %s983 = ssub.s32 %s20, 2
        // Predicated region
        $region57: #{tpu_custom_call.1} parent=55 // pred_check
          %p984 = pneg %p182
        $region58: #{tpu_custom_call.1} parent=55 // pred_check_branch
          %986 = sbr.rel (%p984) target = $region60
        $region59: #{tpu_custom_call.1} parent=55 // pred_region
          %s987 = sand.u32 %s167, 1
          %s988 = scalar_lea.sflag [#allocation3], %s987
          %s989 = sand.u32 %s167, 1
          %s990 = smul.addr %s989, 2
          %s991 = scalar_lea.vmem [#allocation2], %s990
          %992 = dma.done %s988, 32
        $region60: #{tpu_custom_call.1} parent=55 // pred_fallthru
          _
        // Predicated region
        $region61: #{tpu_custom_call.1} parent=55 // pred_check
          %p993 = pneg %p210
        $region62: #{tpu_custom_call.1} parent=55 // pred_check_branch
          %995 = sbr.rel (%p993) target = $region64
        $region63: #{tpu_custom_call.1} parent=55 // pred_region
          %s996 = sand.u32 %s26, 1
          %s997 = scalar_lea.sflag [#allocation5], %s996
          %s998 = sand.u32 %s195, 1
          %s999 = smul.addr %s998, 2
          %s1000 = scalar_lea.vmem [#allocation4], %s999
          %1001 = dma.done %s997, 32
        $region64: #{tpu_custom_call.1} parent=55 // pred_fallthru
          _
        // Predicated region
        $region65: #{tpu_custom_call.1} parent=55 // pred_check
          %p1002 = pneg %p238
        $region66: #{tpu_custom_call.1} parent=55 // pred_check_branch
          %1004 = sbr.rel (%p1002) target = $region68
        $region67: #{tpu_custom_call.1} parent=55 // pred_region
          %s1005 = sand.u32 %s26, 1
          %s1006 = scalar_lea.sflag [#allocation5], %s1005
          %s1007 = sand.u32 %s223, 1
          %s1008 = smul.addr %s1007, 2
          %s1009 = scalar_lea.vmem [#allocation6], %s1008
          %1010 = dma.done %s1006, 32
        $region68: #{tpu_custom_call.1} parent=55 // pred_fallthru
          _
      $region56: #{tpu_custom_call.1} parent=5 // pred_fallthru
        _
    $region6: #{tpu_custom_call.1} parent=1 // loop_footer
      %s24 = sadd.s32 1, %s20
    $region7: #{tpu_custom_call.1} parent=1 // loop_footer_branch
      %19 = sbr.rel target = $region3
    $region8: #{tpu_custom_call.1} parent=1 // loop_exit
      _
    %1011 = vsyncpa [#allocation3], 1
    %s1012 = scalar_lea.sflag [#allocation3], 1
    %1013 = vsyncpa %s1012, 1
    %1014 = vsyncpa [#allocation5], 1
    %s1015 = scalar_lea.sflag [#allocation5], 1
    %1016 = vsyncpa %s1015, 1

</llo_original>
